<compile_context>
chip_gen: v6e
topology: v6e:2x2x1
jax: 0.10.0
libtpu: 0.0.40
codegen_flags: <defaults>
</compile_context>

<pallas_src>
import functools

import jax
import jax.numpy as jnp
from jax.experimental import pallas as pl
from jax.experimental.pallas import tpu as pltpu

HIDDEN = 256
OUT_PAD = 128          # lane-dense padded output width (multiple of 128)
W2T_SUB = 8            # sublane-padded row count of the transposed W2 slab
SMALL_BATCH_MAX = 64   # <= this: VPU/XLU layer-2 path (no MXU, no padded W2)
MAX_BLOCK_B = 1024     # large-batch block cap (fits VMEM on v5e/v6e/v7x)


def _round_up(n, m):
    return ((n + m - 1) // m) * m


# ----------------------------- in-kernel helpers -----------------------------

def _layer1_vpu(x, w1_ref, b1_ref, obs_d):
    """relu6(x @ W1_cat + b1_cat) via obs_d broadcast-MACs on the VPU."""
    acc = x[:, 0:1] * w1_ref[0:1, :]                 # (Bb, 2*HIDDEN)
    for k in range(1, obs_d):                        # static unroll (obs_d = 4)
        acc = acc + x[:, k:k + 1] * w1_ref[k:k + 1, :]
    return jnp.clip(acc + b1_ref[...], 0.0, 6.0)     # (Bb, 2*HIDDEN)


def _policy_value_epilogue(raw, action_d):
    """Masked softmax over policy lanes; value lane passed through; rest 0."""
    col = jax.lax.broadcasted_iota(jnp.int32, raw.shape, 1)
    is_policy = col < action_d
    is_value = col == action_d
    masked = jnp.where(is_policy, raw, jnp.float32(-1e30))
    m = jnp.max(masked, axis=1, keepdims=True)
    e = jnp.where(is_policy, jnp.exp(masked - m), 0.0)
    denom = jnp.sum(e, axis=1, keepdims=True)
    policy = e / denom
    return jnp.where(is_policy, policy, jnp.where(is_value, raw, 0.0))


# --------------------------------- kernels -----------------------------------

def a3c_small_kernel(x_ref, w1_ref, b1_ref, w2t_ref, b2_ref, out_ref,
                     *, action_d, obs_d):
    """Tiny-batch path: layer 2 as broadcast-mul + lane reduce (no MXU)."""
    x = x_ref[...]                                   # (Bb, obs_d)
    h = _layer1_vpu(x, w1_ref, b1_ref, obs_d)        # (Bb, 2*HIDDEN)

    bb = h.shape[0]
    col = jax.lax.broadcasted_iota(jnp.int32, (bb, OUT_PAD), 1)
    raw = jnp.zeros((bb, OUT_PAD), jnp.float32)
    # out_j = <h, W2^T row j>; rows are block-sparse so this covers both the
    # policy logits (j < action_d) and the value (j == action_d).
    for j in range(action_d + 1):                    # static unroll (3 for CartPole)
        cj = jnp.sum(h * w2t_ref[j:j + 1, :], axis=1, keepdims=True)   # (Bb, 1)
        raw = raw + jnp.where(col == j, cj, 0.0)
    raw = raw + b2_ref[...]                          # (Bb, OUT_PAD)

    out_ref[...] = _policy_value_epilogue(raw, action_d)


def a3c_mxu_kernel(x_ref, w1_ref, b1_ref, w2_ref, b2_ref, out_ref,
                   *, action_d, obs_d):
    """Large-batch path: one fused block-diagonal MXU matmul (K=512, N=128)."""
    x = x_ref[...]                                   # (Bb, obs_d)
    h = _layer1_vpu(x, w1_ref, b1_ref, obs_d)        # (Bb, 2*HIDDEN)
    raw = jnp.dot(h, w2_ref[...], preferred_element_type=jnp.float32) + b2_ref[...]
    out_ref[...] = _policy_value_epilogue(raw, action_d)


# ------------------------------ weight packing --------------------------------

def pack_params(params):
    """Fuse the four Linear layers once, ahead of time.

    Returns (W1_cat, b1_cat, W2T_small, W2_pad, b2_pad):
      W1_cat   (obs_d, 2H)   : [Wp1 | Wv1]
      b1_cat   (1, 2H)       : [bp1 | bv1]
      W2T_small(8, 2H)       : row j<action_d -> Wp2[:, j] in lanes [:H]
                               row action_d   -> Wv2[:, 0] in lanes [H:]
      W2_pad   (2H, 128)     : block-diagonal, lane-padded (MXU path)
      b2_pad   (1, 128)      : [bp2 | bv2 | zeros]
    """
    wp1, bp1, wp2, bp2, wv1, bv1, wv2, bv2 = params
    obs_d, hidden = wp1.shape
    action_d = wp2.shape[1]
    assert action_d + 1 <= OUT_PAD
    assert action_d + 1 <= W2T_SUB

    w1 = jnp.concatenate([wp1, wv1], axis=1)                    # (obs_d, 2H)
    b1 = jnp.concatenate([bp1, bv1], axis=1)                    # (1, 2H)

    w2t = jnp.zeros((W2T_SUB, 2 * hidden), jnp.float32)
    w2t = w2t.at[:action_d, :hidden].set(wp2.T)
    w2t = w2t.at[action_d, hidden:].set(wv2[:, 0])              # (8, 2H) ~16 KiB

    w2p = jnp.zeros((2 * hidden, OUT_PAD), jnp.float32)
    w2p = w2p.at[:hidden, :action_d].set(wp2)
    w2p = w2p.at[hidden:, action_d:action_d + 1].set(wv2)       # (2H, 128)

    b2 = jnp.zeros((1, OUT_PAD), jnp.float32)
    b2 = b2.at[:, :action_d].set(bp2)
    b2 = b2.at[:, action_d:action_d + 1].set(bv2)               # (1, 128)
    return (w1, b1, w2t, w2p, b2), action_d, obs_d, hidden


# --------------------------------- wrappers ------------------------------------

def a3c_forward_padded(x, packed, action_d, obs_d, hidden):
    """Returns the lane-dense (B, 128) slab [policy | value | zeros]."""
    w1, b1, w2t, w2p, b2 = packed
    B = x.shape[0]
    two_h = 2 * hidden

    if B <= SMALL_BATCH_MAX:
        # Actor-step regime: single grid step, no MXU, no padded-weight DMA.
        kernel = functools.partial(a3c_small_kernel,
                                   action_d=action_d, obs_d=obs_d)
        return pl.pallas_call(
            kernel,
            out_shape=jax.ShapeDtypeStruct((B, OUT_PAD), jnp.float32),
            grid=(1,),
            in_specs=[
                pl.BlockSpec((B, obs_d), lambda i: (0, 0)),          # x
                pl.BlockSpec((obs_d, two_h), lambda i: (0, 0)),      # W1_cat
                pl.BlockSpec((1, two_h), lambda i: (0, 0)),          # b1_cat
                pl.BlockSpec((W2T_SUB, two_h), lambda i: (0, 0)),    # W2^T slab
                pl.BlockSpec((1, OUT_PAD), lambda i: (0, 0)),        # b2_pad
            ],
            out_specs=pl.BlockSpec((B, OUT_PAD), lambda i: (0, 0)),
            compiler_params=pltpu.CompilerParams(
                dimension_semantics=("arbitrary",)),
        )(x, w1, b1, w2t, b2)

    # Training regime: MXU path, big batch blocks, ragged B handled by padding.
    block_b = min(MAX_BLOCK_B, _round_up(B, 8))
    b_pad = _round_up(B, block_b)
    x_in = jnp.pad(x, ((0, b_pad - B), (0, 0))) if b_pad != B else x
    grid = (b_pad // block_b,)

    kernel = functools.partial(a3c_mxu_kernel, action_d=action_d, obs_d=obs_d)
    out = pl.pallas_call(
        kernel,
        out_shape=jax.ShapeDtypeStruct((b_pad, OUT_PAD), jnp.float32),
        grid=grid,
        in_specs=[
            pl.BlockSpec((block_b, obs_d), lambda i: (i, 0)),        # x
            pl.BlockSpec((obs_d, two_h), lambda i: (0, 0)),          # W1_cat
            pl.BlockSpec((1, two_h), lambda i: (0, 0)),              # b1_cat
            pl.BlockSpec((two_h, OUT_PAD), lambda i: (0, 0)),        # W2_pad
            pl.BlockSpec((1, OUT_PAD), lambda i: (0, 0)),            # b2_pad
        ],
        out_specs=pl.BlockSpec((block_b, OUT_PAD), lambda i: (i, 0)),
        compiler_params=pltpu.CompilerParams(
            dimension_semantics=("parallel",)),
    )(x_in, w1, b1, w2p, b2)
    return out[:B] if b_pad != B else out


def a3c_net_forward(x, packed, action_d, obs_d, hidden):
    """(policy, value) — matches the PyTorch Net.forward output."""
    out = a3c_forward_padded(x, packed, action_d, obs_d, hidden)
    return out[:, :action_d], out[:, action_d:action_d + 1]


# ------------------------------ init / reference -------------------------------

def init_params(key, obs_d, action_d):
    """Deterministic normal(0, 0.1) init (mirrors the typical set_init helper)."""
    ks = jax.random.split(key, 4)
    std = 0.1
    wp1 = jax.random.normal(ks[0], (obs_d, HIDDEN), jnp.float32) * std
    bp1 = jnp.zeros((1, HIDDEN), jnp.float32)
    wp2 = jax.random.normal(ks[1], (HIDDEN, action_d), jnp.float32) * std
    bp2 = jnp.zeros((1, action_d), jnp.float32)
    wv1 = jax.random.normal(ks[2], (obs_d, HIDDEN), jnp.float32) * std
    bv1 = jnp.zeros((1, HIDDEN), jnp.float32)
    wv2 = jax.random.normal(ks[3], (HIDDEN, 1), jnp.float32) * std
    bv2 = jnp.zeros((1, 1), jnp.float32)
    return (wp1, bp1, wp2, bp2, wv1, bv1, wv2, bv2)


def reference_forward(x, params):
    (wp1, bp1, wp2, bp2, wv1, bv1, wv2, bv2) = params
    h_p = jnp.clip(x @ wp1 + bp1, 0.0, 6.0)
    policy = jax.nn.softmax(h_p @ wp2 + bp2, axis=1)
    h_v = jnp.clip(x @ wv1 + bv1, 0.0, 6.0)
    value = h_v @ wv2 + bv2
    return policy, value


if __name__ == "__main__":
    # CartPole-like dims: observation_d=4, action_d=2.
    obs_d, action_d = 4, 2
    key = jax.random.PRNGKey(0)
    k_x, k_p, k_x2 = jax.random.split(key, 3)
    params = init_params(k_p, obs_d, action_d)

    # Pack/fuse weights once (amortized outside the per-step forward).
    packed, action_d_, obs_d_, hidden_ = pack_params(params)
    fwd = jax.jit(a3c_net_forward, static_argnums=(2, 3, 4))

    # --- small actor-step batch: VPU/XLU path, no MXU, no padded W2 stream ---
    B = 8
    x = jax.random.normal(k_x, (B, obs_d), jnp.float32)
    policy, value = fwd(x, packed, action_d_, obs_d_, hidden_)
    policy = jax.block_until_ready(policy)
    value = jax.block_until_ready(value)
    ref_policy, ref_value = reference_forward(x, params)
    assert policy.shape == (B, action_d) and value.shape == (B, 1)
    assert jnp.allclose(policy, ref_policy, atol=1e-5, rtol=1e-5)
    assert jnp.allclose(value, ref_value, atol=1e-5, rtol=1e-5)
    assert jnp.allclose(jnp.sum(policy, axis=1), 1.0, atol=1e-5)

    # --- large ragged training batch: MXU path, batch padded to the block ---
    B2 = 100
    x2 = jax.random.normal(k_x2, (B2, obs_d), jnp.float32)
    policy2, value2 = fwd(x2, packed, action_d_, obs_d_, hidden_)
    policy2 = jax.block_until_ready(policy2)
    value2 = jax.block_until_ready(value2)
    ref_policy2, ref_value2 = reference_forward(x2, params)
    assert policy2.shape == (B2, action_d) and value2.shape == (B2, 1)
    assert jnp.allclose(policy2, ref_policy2, atol=1e-5, rtol=1e-5)
    assert jnp.allclose(value2, ref_value2, atol=1e-5, rtol=1e-5)

    print("KERNEL_OK")
</pallas_src>

<mosaic_0001>
module attributes {stable_mosaic.version = 11 : i64} {
  func.func @a3c_small_kernel(%arg0: i32, %arg1: memref<8x4xf32, #tpu.memory_space<vmem>>, %arg2: memref<4x512xf32, #tpu.memory_space<vmem>>, %arg3: memref<1x512xf32, #tpu.memory_space<vmem>>, %arg4: memref<8x512xf32, #tpu.memory_space<vmem>>, %arg5: memref<1x128xf32, #tpu.memory_space<vmem>>, %arg6: memref<8x128xf32, #tpu.memory_space<vmem>>) attributes {dimension_semantics = [#tpu.dimension_semantics<arbitrary>], iteration_bounds = array<i64: 1>, scalar_prefetch = 0 : i64, scratch_operands = 0 : i64, tpu.core_type = #tpu.core_type<tc>, window_params = [{pipeline_mode = #tpu.pipeline_mode<synchronous>, transform_indices = @transform_0, window_bounds = array<i64: 8, 4>}, {pipeline_mode = #tpu.pipeline_mode<synchronous>, transform_indices = @transform_1, window_bounds = array<i64: 4, 512>}, {pipeline_mode = #tpu.pipeline_mode<synchronous>, transform_indices = @transform_2, window_bounds = array<i64: 1, 512>}, {pipeline_mode = #tpu.pipeline_mode<synchronous>, transform_indices = @transform_3, window_bounds = array<i64: 8, 512>}, {pipeline_mode = #tpu.pipeline_mode<synchronous>, transform_indices = @transform_4, window_bounds = array<i64: 1, 128>}, {pipeline_mode = #tpu.pipeline_mode<synchronous>, transform_indices = @transform_5, window_bounds = array<i64: 8, 128>}]} {
    %c0 = arith.constant 0 : index
    %c0_0 = arith.constant 0 : index
    %0 = vector.load %arg1[%c0, %c0_0] : memref<8x4xf32, #tpu.memory_space<vmem>>, vector<8x4xf32>
    %1 = vector.extract_strided_slice %0 {offsets = [0, 0], sizes = [8, 1], strides = [1, 1]} : vector<8x4xf32> to vector<8x1xf32>
    %c0_1 = arith.constant 0 : index
    %c0_2 = arith.constant 0 : index
    %2 = vector.load %arg2[%c0_1, %c0_2] : memref<4x512xf32, #tpu.memory_space<vmem>>, vector<1x512xf32>
    %3 = vector.broadcast %1 : vector<8x1xf32> to vector<8x512xf32>
    %4 = vector.broadcast %2 : vector<1x512xf32> to vector<8x512xf32>
    %5 = arith.mulf %3, %4 : vector<8x512xf32>
    %6 = vector.extract_strided_slice %0 {offsets = [0, 1], sizes = [8, 1], strides = [1, 1]} : vector<8x4xf32> to vector<8x1xf32>
    %c1 = arith.constant 1 : index
    %c0_3 = arith.constant 0 : index
    %7 = vector.load %arg2[%c1, %c0_3] : memref<4x512xf32, #tpu.memory_space<vmem>>, vector<1x512xf32>
    %8 = vector.broadcast %6 : vector<8x1xf32> to vector<8x512xf32>
    %9 = vector.broadcast %7 : vector<1x512xf32> to vector<8x512xf32>
    %10 = arith.mulf %8, %9 : vector<8x512xf32>
    %11 = arith.addf %5, %10 : vector<8x512xf32>
    %12 = vector.extract_strided_slice %0 {offsets = [0, 2], sizes = [8, 1], strides = [1, 1]} : vector<8x4xf32> to vector<8x1xf32>
    %c2 = arith.constant 2 : index
    %c0_4 = arith.constant 0 : index
    %13 = vector.load %arg2[%c2, %c0_4] : memref<4x512xf32, #tpu.memory_space<vmem>>, vector<1x512xf32>
    %14 = vector.broadcast %12 : vector<8x1xf32> to vector<8x512xf32>
    %15 = vector.broadcast %13 : vector<1x512xf32> to vector<8x512xf32>
    %16 = arith.mulf %14, %15 : vector<8x512xf32>
    %17 = arith.addf %11, %16 : vector<8x512xf32>
    %18 = vector.extract_strided_slice %0 {offsets = [0, 3], sizes = [8, 1], strides = [1, 1]} : vector<8x4xf32> to vector<8x1xf32>
    %c3 = arith.constant 3 : index
    %c0_5 = arith.constant 0 : index
    %19 = vector.load %arg2[%c3, %c0_5] : memref<4x512xf32, #tpu.memory_space<vmem>>, vector<1x512xf32>
    %20 = vector.broadcast %18 : vector<8x1xf32> to vector<8x512xf32>
    %21 = vector.broadcast %19 : vector<1x512xf32> to vector<8x512xf32>
    %22 = arith.mulf %20, %21 : vector<8x512xf32>
    %23 = arith.addf %17, %22 : vector<8x512xf32>
    %c0_6 = arith.constant 0 : index
    %c0_7 = arith.constant 0 : index
    %24 = vector.load %arg3[%c0_6, %c0_7] : memref<1x512xf32, #tpu.memory_space<vmem>>, vector<1x512xf32>
    %25 = vector.broadcast %24 : vector<1x512xf32> to vector<8x512xf32>
    %26 = arith.addf %23, %25 : vector<8x512xf32>
    %cst = arith.constant 0.000000e+00 : f32
    %cst_8 = arith.constant 6.000000e+00 : f32
    %27 = vector.broadcast %cst : f32 to vector<8x512xf32>
    %28 = arith.maximumf %27, %26 : vector<8x512xf32>
    %29 = vector.broadcast %cst_8 : f32 to vector<8x512xf32>
    %30 = arith.minimumf %29, %28 : vector<8x512xf32>
    %31 = tpu.iota {dimensions = array<i32: 1>} : vector<8x128xi32>
    %cst_9 = arith.constant 0.000000e+00 : f32
    %32 = vector.broadcast %cst_9 : f32 to vector<8x128xf32>
    %c0_10 = arith.constant 0 : index
    %c0_11 = arith.constant 0 : index
    %33 = vector.load %arg4[%c0_10, %c0_11] : memref<8x512xf32, #tpu.memory_space<vmem>>, vector<1x512xf32>
    %34 = vector.broadcast %33 : vector<1x512xf32> to vector<8x512xf32>
    %35 = arith.mulf %30, %34 : vector<8x512xf32>
    %cst_12 = arith.constant dense<0.000000e+00> : vector<8xf32>
    %36 = vector.multi_reduction <add>, %35, %cst_12 [1] : vector<8x512xf32> to vector<8xf32>
    %37 = vector.shape_cast %36 : vector<8xf32> to vector<8x1xf32>
    %c0_i32 = arith.constant 0 : i32
    %38 = vector.broadcast %c0_i32 : i32 to vector<8x128xi32>
    %39 = arith.cmpi eq, %31, %38 : vector<8x128xi32>
    %cst_13 = arith.constant 0.000000e+00 : f32
    %40 = vector.shape_cast %37 : vector<8x1xf32> to vector<8x1xf32>
    %41 = vector.broadcast %40 : vector<8x1xf32> to vector<8x128xf32>
    %42 = vector.broadcast %cst_13 : f32 to vector<8x128xf32>
    %43 = arith.select %39, %41, %42 : vector<8x128xi1>, vector<8x128xf32>
    %44 = arith.addf %32, %43 : vector<8x128xf32>
    %c1_14 = arith.constant 1 : index
    %c0_15 = arith.constant 0 : index
    %45 = vector.load %arg4[%c1_14, %c0_15] : memref<8x512xf32, #tpu.memory_space<vmem>>, vector<1x512xf32>
    %46 = vector.broadcast %45 : vector<1x512xf32> to vector<8x512xf32>
    %47 = arith.mulf %30, %46 : vector<8x512xf32>
    %cst_16 = arith.constant dense<0.000000e+00> : vector<8xf32>
    %48 = vector.multi_reduction <add>, %47, %cst_16 [1] : vector<8x512xf32> to vector<8xf32>
    %49 = vector.shape_cast %48 : vector<8xf32> to vector<8x1xf32>
    %c1_i32 = arith.constant 1 : i32
    %50 = vector.broadcast %c1_i32 : i32 to vector<8x128xi32>
    %51 = arith.cmpi eq, %31, %50 : vector<8x128xi32>
    %cst_17 = arith.constant 0.000000e+00 : f32
    %52 = vector.shape_cast %49 : vector<8x1xf32> to vector<8x1xf32>
    %53 = vector.broadcast %52 : vector<8x1xf32> to vector<8x128xf32>
    %54 = vector.broadcast %cst_17 : f32 to vector<8x128xf32>
    %55 = arith.select %51, %53, %54 : vector<8x128xi1>, vector<8x128xf32>
    %56 = arith.addf %44, %55 : vector<8x128xf32>
    %c2_18 = arith.constant 2 : index
    %c0_19 = arith.constant 0 : index
    %57 = vector.load %arg4[%c2_18, %c0_19] : memref<8x512xf32, #tpu.memory_space<vmem>>, vector<1x512xf32>
    %58 = vector.broadcast %57 : vector<1x512xf32> to vector<8x512xf32>
    %59 = arith.mulf %30, %58 : vector<8x512xf32>
    %cst_20 = arith.constant dense<0.000000e+00> : vector<8xf32>
    %60 = vector.multi_reduction <add>, %59, %cst_20 [1] : vector<8x512xf32> to vector<8xf32>
    %61 = vector.shape_cast %60 : vector<8xf32> to vector<8x1xf32>
    %c2_i32 = arith.constant 2 : i32
    %62 = vector.broadcast %c2_i32 : i32 to vector<8x128xi32>
    %63 = arith.cmpi eq, %31, %62 : vector<8x128xi32>
    %cst_21 = arith.constant 0.000000e+00 : f32
    %64 = vector.shape_cast %61 : vector<8x1xf32> to vector<8x1xf32>
    %65 = vector.broadcast %64 : vector<8x1xf32> to vector<8x128xf32>
    %66 = vector.broadcast %cst_21 : f32 to vector<8x128xf32>
    %67 = arith.select %63, %65, %66 : vector<8x128xi1>, vector<8x128xf32>
    %68 = arith.addf %56, %67 : vector<8x128xf32>
    %c0_22 = arith.constant 0 : index
    %c0_23 = arith.constant 0 : index
    %69 = vector.load %arg5[%c0_22, %c0_23] : memref<1x128xf32, #tpu.memory_space<vmem>>, vector<1x128xf32>
    %70 = vector.broadcast %69 : vector<1x128xf32> to vector<8x128xf32>
    %71 = arith.addf %68, %70 : vector<8x128xf32>
    %72 = tpu.iota {dimensions = array<i32: 1>} : vector<8x128xi32>
    %c2_i32_24 = arith.constant 2 : i32
    %73 = vector.broadcast %c2_i32_24 : i32 to vector<8x128xi32>
    %74 = arith.cmpi slt, %72, %73 : vector<8x128xi32>
    %c2_i32_25 = arith.constant 2 : i32
    %75 = vector.broadcast %c2_i32_25 : i32 to vector<8x128xi32>
    %76 = arith.cmpi eq, %72, %75 : vector<8x128xi32>
    %cst_26 = arith.constant -1.000000e+30 : f32
    %77 = vector.broadcast %cst_26 : f32 to vector<8x128xf32>
    %78 = arith.select %74, %71, %77 : vector<8x128xi1>, vector<8x128xf32>
    %cst_27 = arith.constant dense<0xFF800000> : vector<8xf32>
    %79 = vector.multi_reduction <maximumf>, %78, %cst_27 [1] : vector<8x128xf32> to vector<8xf32>
    %80 = vector.shape_cast %79 : vector<8xf32> to vector<8x1xf32>
    %81 = vector.broadcast %80 : vector<8x1xf32> to vector<8x128xf32>
    %82 = arith.subf %78, %81 : vector<8x128xf32>
    %83 = math.exp %82 : vector<8x128xf32>
    %cst_28 = arith.constant 0.000000e+00 : f32
    %84 = vector.broadcast %cst_28 : f32 to vector<8x128xf32>
    %85 = arith.select %74, %83, %84 : vector<8x128xi1>, vector<8x128xf32>
    %cst_29 = arith.constant dense<0.000000e+00> : vector<8xf32>
    %86 = vector.multi_reduction <add>, %85, %cst_29 [1] : vector<8x128xf32> to vector<8xf32>
    %87 = vector.shape_cast %86 : vector<8xf32> to vector<8x1xf32>
    %88 = vector.broadcast %87 : vector<8x1xf32> to vector<8x128xf32>
    %89 = arith.divf %85, %88 : vector<8x128xf32>
    %cst_30 = arith.constant 0.000000e+00 : f32
    %90 = vector.broadcast %cst_30 : f32 to vector<8x128xf32>
    %91 = arith.select %76, %71, %90 : vector<8x128xi1>, vector<8x128xf32>
    %92 = arith.select %74, %89, %91 : vector<8x128xi1>, vector<8x128xf32>
    %c0_31 = arith.constant 0 : index
    %c0_32 = arith.constant 0 : index
    %93 = vector.load %arg6[%c0_31, %c0_32] : memref<8x128xf32, #tpu.memory_space<vmem>>, vector<8x128xf32>
    tpu.vector_store %arg6[%c0_31, %c0_32], %92 {strides = array<i32>} : memref<8x128xf32, #tpu.memory_space<vmem>>, vector<8x128xf32>,
    return
  }
  func.func @transform_0(%arg0: i32) -> (i32, i32) {
    %c0_i32 = arith.constant 0 : i32
    %c0_i32_0 = arith.constant 0 : i32
    %c0_i32_1 = arith.constant 0 : i32
    return %c0_i32, %c0_i32_0 : i32, i32
  }
  func.func @transform_1(%arg0: i32) -> (i32, i32) {
    %c0_i32 = arith.constant 0 : i32
    %c0_i32_0 = arith.constant 0 : i32
    %c0_i32_1 = arith.constant 0 : i32
    return %c0_i32, %c0_i32_0 : i32, i32
  }
  func.func @transform_2(%arg0: i32) -> (i32, i32) {
    %c0_i32 = arith.constant 0 : i32
    %c0_i32_0 = arith.constant 0 : i32
    %c0_i32_1 = arith.constant 0 : i32
    return %c0_i32, %c0_i32_0 : i32, i32
  }
  func.func @transform_3(%arg0: i32) -> (i32, i32) {
    %c0_i32 = arith.constant 0 : i32
    %c0_i32_0 = arith.constant 0 : i32
    %c0_i32_1 = arith.constant 0 : i32
    return %c0_i32, %c0_i32_0 : i32, i32
  }
  func.func @transform_4(%arg0: i32) -> (i32, i32) {
    %c0_i32 = arith.constant 0 : i32
    %c0_i32_0 = arith.constant 0 : i32
    %c0_i32_1 = arith.constant 0 : i32
    return %c0_i32, %c0_i32_0 : i32, i32
  }
  func.func @transform_5(%arg0: i32) -> (i32, i32) {
    %c0_i32 = arith.constant 0 : i32
    %c0_i32_0 = arith.constant 0 : i32
    %c0_i32_1 = arith.constant 0 : i32
    return %c0_i32, %c0_i32_0 : i32, i32
  }
}

</mosaic_0001>

<llo_original>
// kernel: a3c_net_forward.1
$region0: #{a3c_net_forward.1}
  #allocation0 [shape = 'u32[]', space=smem, size = 0x4, offset = 0x4, fixed_abs, tag = 'smem constant byte address 0x4 - core index']
  #allocation1 [shape = 'u32[144,128]{1,0:T(1,128)}', space=vmem, size = 0x12000, scoped, tag = 'internal scratch']
  %s0 = inlined_call_operand.vmem [shape: f32[8,4], index: 0, kind: input, shape index: {}]
  %s1 = inlined_call_operand.vmem [shape: f32[4,512], index: 1, kind: input, shape index: {}]
  %s2 = inlined_call_operand.hbm [shape: f32[1,512], index: 2, kind: input, shape index: {}]
  %s3 = inlined_call_operand.hbm [shape: f32[8,512], index: 3, kind: input, shape index: {}]
  %s4 = inlined_call_operand.vmem [shape: f32[1,128], index: 4, kind: input, shape index: {}]
  %s5 = inlined_call_operand.vmem [shape: f32[8,128], index: 5, kind: output, shape index: {}]
  %s6 = sld [smem:[#allocation0]]
  $region38: #{a3c_net_forward.1} parent=0
    _
  %s8 = ssub.s32 1, %s6
  %s9 = scalar_select 0, %s8, %s6
  $region1: #{a3c_net_forward.1} parent=0
    #allocation2 [shape = 'u8[2048]{0}', space=vmem, size = 0x800, scoped, tag = 'input window, operand 2, single buffered']
    #allocation3 [shape = 's32[1]{0}', space=sflag, size = 0x4, scoped, tag = 'scoped memory for a3c_net_forward.1']
    #allocation4 [shape = 'u8[16384]{0}', space=vmem, size = 0x4000, scoped, tag = 'input window, operand 3, single buffered']
    #allocation5 [shape = 's32[1]{0}', space=sflag, size = 0x4, scoped, tag = 'scoped memory for a3c_net_forward.1']
    %10 = vsyncpa [#allocation3], 0
    %11 = vsyncpa [#allocation5], 0
    // Predicated region
    $region2: #{a3c_net_forward.1} parent=1 // pred_check
      _
    $region3: #{a3c_net_forward.1} parent=1 // pred_check_branch
      %13 = sbr.rel (0) target = $region5
    $region4: #{a3c_net_forward.1} parent=1 // pred_region
      _
    $region5: #{a3c_net_forward.1} parent=1 // pred_fallthru
      _
    // Predicated region
    $region6: #{a3c_net_forward.1} parent=1 // pred_check
      _
    $region7: #{a3c_net_forward.1} parent=1 // pred_check_branch
      %15 = sbr.rel (0) target = $region9
    $region8: #{a3c_net_forward.1} parent=1 // pred_region
      _
    $region9: #{a3c_net_forward.1} parent=1 // pred_fallthru
      _
    // Predicated region
    $region10: #{a3c_net_forward.1} parent=1 // pred_check
      _
    $region11: #{a3c_net_forward.1} parent=1 // pred_check_branch
      %17 = sbr.rel (0) target = $region13
    $region12: #{a3c_net_forward.1} parent=1 // pred_region
      %s19 = ssub.s32 64, 64
      %20 = vsyncadd [#allocation3], %s19
      %s22 = sshll.u32 [#allocation2], 4
      %s23 = int_to_ptr.vmem [resolvable:$true] %s22
      %25 = dma.hbm_to_vmem [thread:$0]  %s2, 64, %s23, [#allocation3]
    $region13: #{a3c_net_forward.1} parent=1 // pred_fallthru
      _
    // Predicated region
    $region14: #{a3c_net_forward.1} parent=1 // pred_check
      _
    $region15: #{a3c_net_forward.1} parent=1 // pred_check_branch
      %27 = sbr.rel (0) target = $region17
    $region16: #{a3c_net_forward.1} parent=1 // pred_region
      %s29 = ssub.s32 512, 512
      %30 = vsyncadd [#allocation5], %s29
      %s32 = sshll.u32 [#allocation4], 4
      %s33 = int_to_ptr.vmem [resolvable:$true] %s32
      %35 = dma.hbm_to_vmem [thread:$0]  %s3, 512, %s33, [#allocation5]
    $region17: #{a3c_net_forward.1} parent=1 // pred_fallthru
      _
    // Predicated region
    $region18: #{a3c_net_forward.1} parent=1 // pred_check
      _
    $region19: #{a3c_net_forward.1} parent=1 // pred_check_branch
      %37 = sbr.rel (0) target = $region21
    $region20: #{a3c_net_forward.1} parent=1 // pred_region
      _
    $region21: #{a3c_net_forward.1} parent=1 // pred_fallthru
      _
    // Predicated region
    $region22: #{a3c_net_forward.1} parent=1 // pred_check
      _
    $region23: #{a3c_net_forward.1} parent=1 // pred_check_branch
      %39 = sbr.rel (0) target = $region25
    $region24: #{a3c_net_forward.1} parent=1 // pred_region
      %40 = dma.done [#allocation3], 64
    $region25: #{a3c_net_forward.1} parent=1 // pred_fallthru
      _
    // Predicated region
    $region26: #{a3c_net_forward.1} parent=1 // pred_check
      _
    $region27: #{a3c_net_forward.1} parent=1 // pred_check_branch
      %42 = sbr.rel (0) target = $region29
    $region28: #{a3c_net_forward.1} parent=1 // pred_region
      %43 = dma.done [#allocation5], 512
    $region29: #{a3c_net_forward.1} parent=1 // pred_fallthru
      _
    %v44 = vld [vmem:[%s0] sm:$0xff]
    %v45 = vld [vmem:[%s1] ss:$4 sm:$0xf]
    %47 = vset.pattern.permute.xlu0 0
    %48 = vperm.xlu0 %47, %v44
    %v49 = vpop.permute.xlu0 %48
    %v52 = vlaneseq
    %v53 = vshrl.u32 %v52, 7
    %v54 = vsub.s32 0, %v53
    %v55 = vrot.slane %v45, %v54
    %v56 = vlaneseq
    %v57 = vshrl.u32 %v56, 7
    %v58 = vsub.s32 1, %v57
    %v59 = vrot.slane %v45, %v58
    %v60 = vlaneseq
    %v61 = vshrl.u32 %v60, 7
    %v62 = vsub.s32 2, %v61
    %v63 = vrot.slane %v45, %v62
    %v64 = vlaneseq
    %v65 = vshrl.u32 %v64, 7
    %v66 = vsub.s32 3, %v65
    %v67 = vrot.slane %v45, %v66
    %v72 = vmul.f32 %v49, %v55
    %v73 = vmul.f32 %v49, %v59
    %v74 = vmul.f32 %v49, %v63
    %v75 = vmul.f32 %v49, %v67
    %s76 = scalar_lea.vmem %s1, 1
    %v77 = vld [vmem:[%s76] ss:$4 sm:$0xf]
    %78 = vset.pattern.permute.xlu0 1
    %79 = vperm.xlu0 %78, %v44
    %v80 = vpop.permute.xlu0 %79
    %v83 = vlaneseq
    %v84 = vshrl.u32 %v83, 7
    %v85 = vsub.s32 0, %v84
    %v86 = vrot.slane %v77, %v85
    %v87 = vlaneseq
    %v88 = vshrl.u32 %v87, 7
    %v89 = vsub.s32 1, %v88
    %v90 = vrot.slane %v77, %v89
    %v91 = vlaneseq
    %v92 = vshrl.u32 %v91, 7
    %v93 = vsub.s32 2, %v92
    %v94 = vrot.slane %v77, %v93
    %v95 = vlaneseq
    %v96 = vshrl.u32 %v95, 7
    %v97 = vsub.s32 3, %v96
    %v98 = vrot.slane %v77, %v97
    %v103 = vmul.f32 %v80, %v86
    %v104 = vmul.f32 %v80, %v90
    %v105 = vmul.f32 %v80, %v94
    %v106 = vmul.f32 %v80, %v98
    %v107 = vadd.f32 %v72, %v103
    %v108 = vadd.f32 %v73, %v104
    %v109 = vadd.f32 %v74, %v105
    %v110 = vadd.f32 %v75, %v106
    %s111 = scalar_lea.vmem %s1, 2
    %v112 = vld [vmem:[%s111] ss:$4 sm:$0xf]
    %113 = vset.pattern.permute.xlu0 2
    %114 = vperm.xlu0 %113, %v44
    %v115 = vpop.permute.xlu0 %114
    %v118 = vlaneseq
    %v119 = vshrl.u32 %v118, 7
    %v120 = vsub.s32 0, %v119
    %v121 = vrot.slane %v112, %v120
    %v122 = vlaneseq
    %v123 = vshrl.u32 %v122, 7
    %v124 = vsub.s32 1, %v123
    %v125 = vrot.slane %v112, %v124
    %v126 = vlaneseq
    %v127 = vshrl.u32 %v126, 7
    %v128 = vsub.s32 2, %v127
    %v129 = vrot.slane %v112, %v128
    %v130 = vlaneseq
    %v131 = vshrl.u32 %v130, 7
    %v132 = vsub.s32 3, %v131
    %v133 = vrot.slane %v112, %v132
    %v138 = vmul.f32 %v115, %v121
    %v139 = vmul.f32 %v115, %v125
    %v140 = vmul.f32 %v115, %v129
    %v141 = vmul.f32 %v115, %v133
    %v142 = vadd.f32 %v107, %v138
    %v143 = vadd.f32 %v108, %v139
    %v144 = vadd.f32 %v109, %v140
    %v145 = vadd.f32 %v110, %v141
    %s146 = scalar_lea.vmem %s1, 3
    %v147 = vld [vmem:[%s146] ss:$4 sm:$0xf]
    %148 = vset.pattern.permute.xlu0 3
    %149 = vperm.xlu0 %148, %v44
    %v150 = vpop.permute.xlu0 %149
    %v153 = vlaneseq
    %v154 = vshrl.u32 %v153, 7
    %v155 = vsub.s32 0, %v154
    %v156 = vrot.slane %v147, %v155
    %v157 = vlaneseq
    %v158 = vshrl.u32 %v157, 7
    %v159 = vsub.s32 1, %v158
    %v160 = vrot.slane %v147, %v159
    %v161 = vlaneseq
    %v162 = vshrl.u32 %v161, 7
    %v163 = vsub.s32 2, %v162
    %v164 = vrot.slane %v147, %v163
    %v165 = vlaneseq
    %v166 = vshrl.u32 %v165, 7
    %v167 = vsub.s32 3, %v166
    %v168 = vrot.slane %v147, %v167
    %v173 = vmul.f32 %v150, %v156
    %v174 = vmul.f32 %v150, %v160
    %v175 = vmul.f32 %v150, %v164
    %v176 = vmul.f32 %v150, %v168
    %v177 = vadd.f32 %v142, %v173
    %v178 = vadd.f32 %v143, %v174
    %v179 = vadd.f32 %v144, %v175
    %v180 = vadd.f32 %v145, %v176
    %v181 = vld [vmem:[#allocation2] sm:$0xf]
    %v183 = vlaneseq
    %v184 = vshrl.u32 %v183, 7
    %v185 = vsub.s32 0, %v184
    %v186 = vrot.slane %v181, %v185
    %v187 = vlaneseq
    %v188 = vshrl.u32 %v187, 7
    %v189 = vsub.s32 1, %v188
    %v190 = vrot.slane %v181, %v189
    %v191 = vlaneseq
    %v192 = vshrl.u32 %v191, 7
    %v193 = vsub.s32 2, %v192
    %v194 = vrot.slane %v181, %v193
    %v195 = vlaneseq
    %v196 = vshrl.u32 %v195, 7
    %v197 = vsub.s32 3, %v196
    %v198 = vrot.slane %v181, %v197
    %v203 = vadd.f32 %v177, %v186
    %v204 = vadd.f32 %v178, %v190
    %v205 = vadd.f32 %v179, %v194
    %v206 = vadd.f32 %v180, %v198
    %v207 = vmax.f32 %v203, 0.0
    %v208 = vmax.f32 %v204, 0.0
    %v209 = vmax.f32 %v205, 0.0
    %v210 = vmax.f32 %v206, 0.0
    %v211 = vmin.f32 %v207, 6.0
    %v212 = vmin.f32 %v208, 6.0
    %v213 = vmin.f32 %v209, 6.0
    %v214 = vmin.f32 %v210, 6.0
    %v215 = vlaneseq
    %v216 = vand.u32 %v215, 127
    %v217 = vld [vmem:[#allocation4] ss:$8 sm:$0xf]
    %v219 = vlaneseq
    %v220 = vshrl.u32 %v219, 7
    %v221 = vsub.s32 0, %v220
    %v222 = vrot.slane %v217, %v221
    %v223 = vlaneseq
    %v224 = vshrl.u32 %v223, 7
    %v225 = vsub.s32 1, %v224
    %v226 = vrot.slane %v217, %v225
    %v227 = vlaneseq
    %v228 = vshrl.u32 %v227, 7
    %v229 = vsub.s32 2, %v228
    %v230 = vrot.slane %v217, %v229
    %v231 = vlaneseq
    %v232 = vshrl.u32 %v231, 7
    %v233 = vsub.s32 3, %v232
    %v234 = vrot.slane %v217, %v233
    %v239 = vmul.f32 %v211, %v222
    %v240 = vmul.f32 %v212, %v226
    %v241 = vmul.f32 %v213, %v230
    %v242 = vmul.f32 %v214, %v234
    %v243 = vadd.f32 %v239, %v240
    %v244 = vadd.f32 %v243, %v241
    %v245 = vadd.f32 %v244, %v242
    %246 = vadd.xlane.f32.xlu0 %v245
    %v247 = vpop.xlane.xlu0 %246
    %vm248 = vcmp.eq.s32.totalorder %v216, 0
    %v249 = vsel %vm248, %v247, 0.0
    %v250 = vadd.f32 %v249, 0.0
    %s251 = scalar_lea.vmem [#allocation4], 1
    %v252 = vld [vmem:[%s251] ss:$8 sm:$0xf]
    %v254 = vlaneseq
    %v255 = vshrl.u32 %v254, 7
    %v256 = vsub.s32 0, %v255
    %v257 = vrot.slane %v252, %v256
    %v258 = vlaneseq
    %v259 = vshrl.u32 %v258, 7
    %v260 = vsub.s32 1, %v259
    %v261 = vrot.slane %v252, %v260
    %v262 = vlaneseq
    %v263 = vshrl.u32 %v262, 7
    %v264 = vsub.s32 2, %v263
    %v265 = vrot.slane %v252, %v264
    %v266 = vlaneseq
    %v267 = vshrl.u32 %v266, 7
    %v268 = vsub.s32 3, %v267
    %v269 = vrot.slane %v252, %v268
    %v274 = vmul.f32 %v211, %v257
    %v275 = vmul.f32 %v212, %v261
    %v276 = vmul.f32 %v213, %v265
    %v277 = vmul.f32 %v214, %v269
    %v278 = vadd.f32 %v274, %v275
    %v279 = vadd.f32 %v278, %v276
    %v280 = vadd.f32 %v279, %v277
    %281 = vadd.xlane.f32.xlu0 %v280
    %v282 = vpop.xlane.xlu0 %281
    %vm283 = vcmp.eq.s32.totalorder %v216, 1
    %v284 = vsel %vm283, %v282, 0.0
    %v285 = vadd.f32 %v250, %v284
    %s286 = scalar_lea.vmem [#allocation4], 2
    %v287 = vld [vmem:[%s286] ss:$8 sm:$0xf]
    %v289 = vlaneseq
    %v290 = vshrl.u32 %v289, 7
    %v291 = vsub.s32 0, %v290
    %v292 = vrot.slane %v287, %v291
    %v293 = vlaneseq
    %v294 = vshrl.u32 %v293, 7
    %v295 = vsub.s32 1, %v294
    %v296 = vrot.slane %v287, %v295
    %v297 = vlaneseq
    %v298 = vshrl.u32 %v297, 7
    %v299 = vsub.s32 2, %v298
    %v300 = vrot.slane %v287, %v299
    %v301 = vlaneseq
    %v302 = vshrl.u32 %v301, 7
    %v303 = vsub.s32 3, %v302
    %v304 = vrot.slane %v287, %v303
    %v309 = vmul.f32 %v211, %v292
    %v310 = vmul.f32 %v212, %v296
    %v311 = vmul.f32 %v213, %v300
    %v312 = vmul.f32 %v214, %v304
    %v313 = vadd.f32 %v309, %v310
    %v314 = vadd.f32 %v313, %v311
    %v315 = vadd.f32 %v314, %v312
    %316 = vadd.xlane.f32.xlu0 %v315
    %v317 = vpop.xlane.xlu0 %316
    %vm318 = vcmp.eq.s32.totalorder %v216, 2
    %v319 = vsel %vm318, %v317, 0.0
    %v320 = vadd.f32 %v285, %v319
    %v321 = vld [vmem:[%s4] sm:$0x1]
    %v323 = vlaneseq
    %v324 = vshrl.u32 %v323, 7
    %v325 = vsub.s32 0, %v324
    %v326 = vrot.slane %v321, %v325
    %v328 = vadd.f32 %v320, %v326
    %vm329 = vcmp.lt.s32.totalorder %v216, 2
    %v330 = vsel %vm329, %v328, -1e+30
    %331 = vmax.xlane.f32.xlu0 %v330
    %v332 = vpop.xlane.xlu0 %331
    %v333 = vsub.f32 %v330, %v332
    %v334 = vmul.f32 %v333, 1.442695
    %v335 = vpow.pop %v334
    %v336 = vsel %vm329, %v335, 0.0
    %337 = vadd.xlane.f32.xlu0 %v336
    %v338 = vpop.xlane.xlu0 %337
    %v339 = vrcp.pop %v338
    %v340 = vmul.f32 %v336, %v339
    %v341 = vsel %vm318, %v328, 0.0
    %v342 = vsel %vm329, %v340, %v341
    %343 = vst [vmem:[%s5] sm:$0xff] %v342
    // Predicated region
    $region30: #{a3c_net_forward.1} parent=1 // pred_check
      _
    $region31: #{a3c_net_forward.1} parent=1 // pred_check_branch
      %345 = sbr.rel (0) target = $region33
    $region32: #{a3c_net_forward.1} parent=1 // pred_region
      _
    $region33: #{a3c_net_forward.1} parent=1 // pred_fallthru
      _
    // Predicated region
    $region34: #{a3c_net_forward.1} parent=1 // pred_check
      _
    $region35: #{a3c_net_forward.1} parent=1 // pred_check_branch
      %347 = sbr.rel (0) target = $region37
    $region36: #{a3c_net_forward.1} parent=1 // pred_region
      _
    $region37: #{a3c_net_forward.1} parent=1 // pred_fallthru
      _
    %348 = vsyncpa [#allocation3], 1
    %349 = vsyncpa [#allocation5], 1

</llo_original>
